<compile_context>
chip_gen: v5e
topology: v5e:2x2
jax: 0.10.0
libtpu: 0.0.40
codegen_flags: <defaults>
</compile_context>

<pallas_src>
import jax
import jax.numpy as jnp
from jax.experimental import pallas as pl
from jax.experimental.pallas import tpu as pltpu

_LANE = 128
_SUBLANE = 8
# Per pipeline slot budget (one x block + one output block); x2 for double buffering.
_PER_SLOT_BYTES = 14 * 1024 * 1024
_VMEM_LIMIT_BYTES = 40 * 1024 * 1024  # comfortably under v7x's 64 MiB physical VMEM


def _round_up(n: int, m: int) -> int:
    return (n + m - 1) // m * m


def _round_down(n: int, m: int) -> int:
    return (n // m) * m


def _packed_kernel(x_ref, w_ref, b_ref, o_ref):
    # x_ref: (TB, k*D) lane-packed rows; w_ref: (k*D, k) block-diagonal f32 weights
    # b_ref: (1, 1) bias in SMEM;        o_ref: (TB, k) f32
    x = x_ref[...].astype(jnp.float32)
    z = jnp.dot(x, w_ref[...],
                preferred_element_type=jnp.float32,
                precision=jax.lax.Precision.HIGHEST)  # keep f32 accuracy on the MXU
    o_ref[...] = jax.nn.sigmoid(z + b_ref[0, 0]).astype(o_ref.dtype)  # EUP exp path


def _row_kernel(x_ref, w_ref, b_ref, o_ref):
    # x_ref: (TB, D); w_ref: (1, D) lane-dense weight row; b_ref: (1,1) SMEM; o: (TB,1)
    x = x_ref[...].astype(jnp.float32)
    z = jnp.sum(x * w_ref[...], axis=-1, keepdims=True)  # VPU mul + XLU lane reduce
    o_ref[...] = jax.nn.sigmoid(z + b_ref[0, 0]).astype(o_ref.dtype)


def _pick_block_rows(n_rows: int, per_row_bytes: int, row_align: int) -> int:
    """Rows per grid step: aligned, <= n_rows, ~_PER_SLOT_BYTES of buffers, and small
    enough that the 'parallel' batch axis keeps >= 2 steps (megacore) when possible."""
    if n_rows <= row_align:
        return n_rows  # single block whose row dim equals the full array dim
    cap = _round_down(max(row_align, _PER_SLOT_BYTES // max(1, per_row_bytes)),
                      row_align)
    cap = min(cap, _round_down(n_rows, row_align))      # never exceed the array
    if n_rows >= 2 * row_align:                         # leave work for both TCs
        cap = min(cap, _round_up(pl.cdiv(n_rows, 2), row_align))
    return max(row_align, cap)


@jax.jit
def cost_sensitive_lr(x, weight, bias):
    """Forward pass of CostSensitiveLRLayer: sigmoid(x @ weight.T + bias).

    x: (B, D) f32/bf16, weight: (1, D), bias: (1,)  ->  (B, 1) f32.
    """
    B, D = x.shape
    itemsize = jnp.dtype(x.dtype).itemsize
    row_align = _SUBLANE * max(1, 4 // itemsize)  # 8 rows (f32) / 16 rows (bf16)

    w_row = weight.reshape(1, D).astype(jnp.float32)
    b_smem = bias.reshape(1, 1).astype(jnp.float32)

    # Lane-dense repack (k consecutive rows per 128-lane row) when shapes allow it.
    k = _LANE // D if (D <= _LANE and _LANE % D == 0) else 1
    packed = (k > 1) and (B % k == 0)
    if packed:
        n_rows, d_in, d_out = B // k, k * D, k
        x_eff = x.reshape(n_rows, d_in)                       # free contiguous view
        w_eff = jnp.kron(jnp.eye(k, dtype=jnp.float32),       # (k*D, k) block-diag
                         w_row.reshape(D, 1))
        kernel = _packed_kernel
    else:
        n_rows, d_in, d_out = B, D, 1
        x_eff = x
        w_eff = w_row                                         # (1, D) lane-dense row
        kernel = _row_kernel

    # VMEM bytes per row for the double-buffered x + output blocks (lane-padded).
    per_row_bytes = _round_up(d_in, _LANE) * itemsize + _round_up(d_out, _LANE) * 4
    block_rows = _pick_block_rows(n_rows, per_row_bytes, row_align)
    n_steps = pl.cdiv(n_rows, block_rows)  # no jnp.pad: Pallas handles the edge block

    out = pl.pallas_call(
        kernel,
        out_shape=jax.ShapeDtypeStruct((n_rows, d_out), jnp.float32),
        grid_spec=pltpu.PrefetchScalarGridSpec(
            num_scalar_prefetch=0,
            grid=(n_steps,),
            in_specs=[
                pl.BlockSpec((block_rows, d_in), lambda i: (i, 0)),  # streamed x
                pl.BlockSpec(w_eff.shape, lambda i: (0, 0)),         # resident weights
                pl.BlockSpec(memory_space=pltpu.MemorySpace.SMEM),   # scalar bias
            ],
            out_specs=pl.BlockSpec((block_rows, d_out), lambda i: (i, 0)),
        ),
        compiler_params=pltpu.CompilerParams(
            dimension_semantics=("parallel",),   # batch tiles are independent
            vmem_limit_bytes=_VMEM_LIMIT_BYTES,
        ),
        cost_estimate=pl.CostEstimate(
            flops=2 * B * D,
            transcendentals=B,
            bytes_accessed=B * D * itemsize + 4 * B + 4 * D + 4,
        ),
    )(x_eff, w_eff, b_smem)

    return out.reshape(B, 1)


def _reference(x, weight, bias):
    # Elementwise f32 reference (avoids XLA's default bf16 matmul demotion on TPU).
    x32 = x.astype(jnp.float32)
    w32 = weight.astype(jnp.float32).reshape(1, -1)
    b32 = bias.astype(jnp.float32).reshape(1, 1)
    return jax.nn.sigmoid(jnp.sum(x32 * w32, axis=-1, keepdims=True) + b32)


def _check(x, weight, bias, atol):
    out = jax.block_until_ready(cost_sensitive_lr(x, weight, bias))
    ref = _reference(x, weight, bias)
    assert out.shape == (x.shape[0], 1), out.shape
    assert jnp.allclose(out, ref, atol=atol, rtol=atol), float(
        jnp.max(jnp.abs(out - ref)))


if __name__ == "__main__":
    key = jax.random.PRNGKey(0)
    kp1, kp2, k1, k2, k3, k4, k5 = jax.random.split(key, 7)

    def make_params(k, num_inputs):
        kw, kb = jax.random.split(k)
        bound = 1.0 / (num_inputs ** 0.5)
        w = jax.random.uniform(kw, (1, num_inputs), jnp.float32, -bound, bound)
        b = jax.random.uniform(kb, (1,), jnp.float32, -bound, bound)
        return w, b

    # Tolerances: the packed path runs its dot on the MXU (multi-pass f32); give
    # it 2e-3 headroom (observed error is typically <1e-5).  The VPU row path is
    # plain f32 math and is checked tightly.
    D = 32
    weight, bias = make_params(kp1, D)

    # 1) Tiny batch, packed path, single grid step.
    _check(jax.random.normal(k1, (8, D), jnp.float32), weight, bias, atol=2e-3)

    # 2) Unaligned batch (50 % 4 != 0) -> generic row path, 2 grid steps,
    #    ragged edge block handled by Pallas (no jnp.pad copy of x).
    _check(jax.random.normal(k2, (50, D), jnp.float32), weight, bias, atol=1e-5)

    # 3) Larger batch, packed path, multi-step pipelined grid with a partial
    #    edge block on the packed rows.
    _check(jax.random.normal(k3, (1000, D), jnp.float32), weight, bias, atol=2e-3)

    # 4) bf16 activations streamed at half the HBM bytes, packed path.
    _check(jax.random.normal(k4, (128, D), jnp.float32).astype(jnp.bfloat16),
           weight, bias, atol=2e-3)

    # 5) num_inputs that does not divide the 128-lane vreg -> generic row path.
    weight20, bias20 = make_params(kp2, 20)
    _check(jax.random.normal(k5, (16, 20), jnp.float32), weight20, bias20, atol=1e-5)

    print("KERNEL_OK")
</pallas_src>

<mosaic_0001>
module attributes {stable_mosaic.version = 11 : i64} {
  func.func @_packed_kernel(%arg0: i32, %arg1: memref<2x128xf32, #tpu.memory_space<vmem>>, %arg2: memref<128x4xf32, #tpu.memory_space<vmem>>, %arg3: memref<1x1xf32, #tpu.memory_space<smem>>, %arg4: memref<2x4xf32, #tpu.memory_space<vmem>>) attributes {dimension_semantics = [#tpu.dimension_semantics<parallel>], iteration_bounds = array<i64: 1>, scalar_prefetch = 0 : i64, scratch_operands = 0 : i64, tpu.core_type = #tpu.core_type<tc>, window_params = [{transform_indices = @transform_0, window_bounds = array<i64: 2, 128>}, {pipeline_mode = #tpu.pipeline_mode<synchronous>, transform_indices = @transform_1, window_bounds = array<i64: 128, 4>}, {transform_indices = @transform_2, window_bounds = array<i64: 1, 1>}, {transform_indices = @transform_3, window_bounds = array<i64: 2, 4>}]} {
    %c0 = arith.constant 0 : index
    %c0_0 = arith.constant 0 : index
    %0 = vector.load %arg1[%c0, %c0_0] : memref<2x128xf32, #tpu.memory_space<vmem>>, vector<2x128xf32>
    %c0_1 = arith.constant 0 : index
    %c0_2 = arith.constant 0 : index
    %1 = vector.load %arg2[%c0_1, %c0_2] : memref<128x4xf32, #tpu.memory_space<vmem>>, vector<128x4xf32>
    %cst = arith.constant dense<0.000000e+00> : vector<2x4xf32>
    %2 = tpu.matmul %0, %1, %cst {dimension_numbers = #tpu.dot_dimension_numbers<[1], [0], [0], [1], [0, 0, 1, 1], [], []>, precision = #tpu.contract_precision<fp32>} : vector<2x128xf32>, vector<128x4xf32>, vector<2x4xf32> -> vector<2x4xf32>
    %c0_3 = arith.constant 0 : index
    %c0_4 = arith.constant 0 : index
    %3 = memref.load %arg3[%c0_3, %c0_4] : memref<1x1xf32, #tpu.memory_space<smem>>
    %4 = vector.broadcast %3 : f32 to vector<2x4xf32>
    %5 = arith.addf %2, %4 : vector<2x4xf32>
    %6 = arith.negf %5 : vector<2x4xf32>
    %7 = math.exp %6 : vector<2x4xf32>
    %cst_5 = arith.constant 1.000000e+00 : f32
    %8 = vector.broadcast %cst_5 : f32 to vector<2x4xf32>
    %9 = arith.addf %8, %7 : vector<2x4xf32>
    %10 = arith.divf %8, %9 : vector<2x4xf32>
    %c0_6 = arith.constant 0 : index
    %c0_7 = arith.constant 0 : index
    %11 = vector.load %arg4[%c0_6, %c0_7] : memref<2x4xf32, #tpu.memory_space<vmem>>, vector<2x4xf32>
    tpu.vector_store %arg4[%c0_6, %c0_7], %10 {strides = array<i32>} : memref<2x4xf32, #tpu.memory_space<vmem>>, vector<2x4xf32>,
    return
  }
  func.func @transform_0(%arg0: i32) -> (i32, i32) {
    %c0_i32 = arith.constant 0 : i32
    %c0_i32_0 = arith.constant 0 : i32
    return %arg0, %c0_i32 : i32, i32
  }
  func.func @transform_1(%arg0: i32) -> (i32, i32) {
    %c0_i32 = arith.constant 0 : i32
    %c0_i32_0 = arith.constant 0 : i32
    %c0_i32_1 = arith.constant 0 : i32
    return %c0_i32, %c0_i32_0 : i32, i32
  }
  func.func @transform_2(%arg0: i32) -> (i32, i32) {
    %c0_i32 = arith.constant 0 : i32
    %c0_i32_0 = arith.constant 0 : i32
    %c0_i32_1 = arith.constant 0 : i32
    return %c0_i32, %c0_i32_0 : i32, i32
  }
  func.func @transform_3(%arg0: i32) -> (i32, i32) {
    %c0_i32 = arith.constant 0 : i32
    %c0_i32_0 = arith.constant 0 : i32
    return %arg0, %c0_i32 : i32, i32
  }
}

</mosaic_0001>

<llo_original>
// kernel: cost_sensitive_lr.1
$region0: #{cost_sensitive_lr.1}
  #allocation0 [shape = 'u32[]', space=smem, size = 0x4, offset = 0x4, fixed_abs, tag = 'smem constant byte address 0x4 - core index']
  #allocation1 [shape = 'u32[72,128]{1,0:T(1,128)}', space=vmem, size = 0x9000, scoped, tag = 'internal scratch']
  #allocation2 [shape = 'f32[1,1]{1,0:T(1,128)S(6)}', space=smem, size = 0x200, scoped, tag = 'scoped memory for cost_sensitive_lr.1']
  %s0 = inlined_call_operand.vmem [shape: f32[2,128], index: 0, kind: input, shape index: {}]
  %s1 = inlined_call_operand.vmem [shape: f32[128,4], index: 1, kind: input, shape index: {}]
  %s2 = inlined_call_operand.<no memory space> [shape: f32[1,1], index: 2, kind: input, shape index: {}]
  %s3 = inlined_call_operand.vmem [shape: f32[2,4], index: 3, kind: output, shape index: {}]
  %s4 = sld [smem:[#allocation0]]
  $region22: #{cost_sensitive_lr.1} parent=0
    _
  %s6 = ssub.s32 1, %s4
  %s7 = scalar_select 0, %s6, %s4
  %8 = sst [smem:[#allocation2]] %s2
  // Predicated region
  $region2: #{cost_sensitive_lr.1} parent=0 // pred_check
    _
  $region3: #{cost_sensitive_lr.1} parent=0 // pred_check_branch
    %10 = sbr.rel (0) target = $region5
  $region4: #{cost_sensitive_lr.1} parent=0 // pred_region
    _
  $region5: #{cost_sensitive_lr.1} parent=0 // pred_fallthru
    _
  // Predicated region
  $region6: #{cost_sensitive_lr.1} parent=0 // pred_check
    _
  $region7: #{cost_sensitive_lr.1} parent=0 // pred_check_branch
    %12 = sbr.rel (0) target = $region9
  $region8: #{cost_sensitive_lr.1} parent=0 // pred_region
    _
  $region9: #{cost_sensitive_lr.1} parent=0 // pred_fallthru
    _
  // Predicated region
  $region10: #{cost_sensitive_lr.1} parent=0 // pred_check
    _
  $region11: #{cost_sensitive_lr.1} parent=0 // pred_check_branch
    %14 = sbr.rel (0) target = $region13
  $region12: #{cost_sensitive_lr.1} parent=0 // pred_region
    _
  $region13: #{cost_sensitive_lr.1} parent=0 // pred_fallthru
    _
  %v15 = vld [vmem:[%s0] sm:$0x3]
  %v16 = vld [vmem:[%s1] sm:$0xff]
  %v17 = vld [vmem:[%s1 + $0x8] sm:$0xff]
  %v18 = vld [vmem:[%s1 + $0x10] sm:$0xff]
  %v19 = vld [vmem:[%s1 + $0x18] sm:$0xff]
  %v20 = vld [vmem:[%s1 + $0x20] sm:$0xff]
  %v21 = vld [vmem:[%s1 + $0x28] sm:$0xff]
  %v22 = vld [vmem:[%s1 + $0x30] sm:$0xff]
  %v23 = vld [vmem:[%s1 + $0x38] sm:$0xff]
  %v24 = vld [vmem:[%s1 + $0x40] sm:$0xff]
  %v25 = vld [vmem:[%s1 + $0x48] sm:$0xff]
  %v26 = vld [vmem:[%s1 + $0x50] sm:$0xff]
  %v27 = vld [vmem:[%s1 + $0x58] sm:$0xff]
  %v28 = vld [vmem:[%s1 + $0x60] sm:$0xff]
  %v29 = vld [vmem:[%s1 + $0x68] sm:$0xff]
  %v30 = vld [vmem:[%s1 + $0x70] sm:$0xff]
  %v31 = vld [vmem:[%s1 + $0x78] sm:$0xff]
  %s32 = sld [smem:[#allocation2]]
  %v33 = vstv %s32
  %v34 = vand.u32 %v31, 4294901760
  %35 = vmatpush.msra.mxu0 %v34
  %v36 = vand.u32 %v30, 4294901760
  %37 = vmatpush.msra.mxu0 %v36
  %v38 = vand.u32 %v29, 4294901760
  %39 = vmatpush.msra.mxu0 %v38
  %v40 = vand.u32 %v28, 4294901760
  %41 = vmatpush.msra.mxu0 %v40
  %v42 = vand.u32 %v27, 4294901760
  %43 = vmatpush.msra.mxu0 %v42
  %v44 = vand.u32 %v26, 4294901760
  %45 = vmatpush.msra.mxu0 %v44
  %v46 = vand.u32 %v25, 4294901760
  %47 = vmatpush.msra.mxu0 %v46
  %v48 = vand.u32 %v24, 4294901760
  %49 = vmatpush.msra.mxu0 %v48
  %v50 = vand.u32 %v23, 4294901760
  %51 = vmatpush.msra.mxu0 %v50
  %v52 = vand.u32 %v22, 4294901760
  %53 = vmatpush.msra.mxu0 %v52
  %v54 = vand.u32 %v21, 4294901760
  %55 = vmatpush.msra.mxu0 %v54
  %v56 = vand.u32 %v20, 4294901760
  %57 = vmatpush.msra.mxu0 %v56
  %v58 = vand.u32 %v19, 4294901760
  %59 = vmatpush.msra.mxu0 %v58
  %v60 = vand.u32 %v18, 4294901760
  %61 = vmatpush.msra.mxu0 %v60
  %v62 = vand.u32 %v17, 4294901760
  %63 = vmatpush.msra.mxu0 %v62
  %v64 = vand.u32 %v16, 4294901760
  %65 = vmatpush.msra.mxu0 %v64
  %v66 = vand.u32 %v15, 4294901760
  %v67 = vsub.f32 %v15, %v66
  %v68 = vand.u32 %v67, 4294901760
  %v69 = vsub.f32 %v67, %v68
  %v70 = vand.u32 %v69, 4294901760
  %71 = vmatmul.f32.gmra.mxu0 %v70
  %v72 = vpop.f32.mrf.mxu0
  %v73 = vadd.f32 %v33, %v72
  %74 = vdwg.mxu0
  %v75 = vand.u32 %v31, 4294901760
  %v76 = vsub.f32 %v31, %v75
  %v77 = vand.u32 %v76, 4294901760
  %v78 = vsub.f32 %v76, %v77
  %v79 = vand.u32 %v78, 4294901760
  %80 = vmatpush.msra.mxu0 %v79
  %v81 = vand.u32 %v30, 4294901760
  %v82 = vsub.f32 %v30, %v81
  %v83 = vand.u32 %v82, 4294901760
  %v84 = vsub.f32 %v82, %v83
  %v85 = vand.u32 %v84, 4294901760
  %86 = vmatpush.msra.mxu0 %v85
  %v87 = vand.u32 %v29, 4294901760
  %v88 = vsub.f32 %v29, %v87
  %v89 = vand.u32 %v88, 4294901760
  %v90 = vsub.f32 %v88, %v89
  %v91 = vand.u32 %v90, 4294901760
  %92 = vmatpush.msra.mxu0 %v91
  %v93 = vand.u32 %v28, 4294901760
  %v94 = vsub.f32 %v28, %v93
  %v95 = vand.u32 %v94, 4294901760
  %v96 = vsub.f32 %v94, %v95
  %v97 = vand.u32 %v96, 4294901760
  %98 = vmatpush.msra.mxu0 %v97
  %v99 = vand.u32 %v27, 4294901760
  %v100 = vsub.f32 %v27, %v99
  %v101 = vand.u32 %v100, 4294901760
  %v102 = vsub.f32 %v100, %v101
  %v103 = vand.u32 %v102, 4294901760
  %104 = vmatpush.msra.mxu0 %v103
  %v105 = vand.u32 %v26, 4294901760
  %v106 = vsub.f32 %v26, %v105
  %v107 = vand.u32 %v106, 4294901760
  %v108 = vsub.f32 %v106, %v107
  %v109 = vand.u32 %v108, 4294901760
  %110 = vmatpush.msra.mxu0 %v109
  %v111 = vand.u32 %v25, 4294901760
  %v112 = vsub.f32 %v25, %v111
  %v113 = vand.u32 %v112, 4294901760
  %v114 = vsub.f32 %v112, %v113
  %v115 = vand.u32 %v114, 4294901760
  %116 = vmatpush.msra.mxu0 %v115
  %v117 = vand.u32 %v24, 4294901760
  %v118 = vsub.f32 %v24, %v117
  %v119 = vand.u32 %v118, 4294901760
  %v120 = vsub.f32 %v118, %v119
  %v121 = vand.u32 %v120, 4294901760
  %122 = vmatpush.msra.mxu0 %v121
  %v123 = vand.u32 %v23, 4294901760
  %v124 = vsub.f32 %v23, %v123
  %v125 = vand.u32 %v124, 4294901760
  %v126 = vsub.f32 %v124, %v125
  %v127 = vand.u32 %v126, 4294901760
  %128 = vmatpush.msra.mxu0 %v127
  %v129 = vand.u32 %v22, 4294901760
  %v130 = vsub.f32 %v22, %v129
  %v131 = vand.u32 %v130, 4294901760
  %v132 = vsub.f32 %v130, %v131
  %v133 = vand.u32 %v132, 4294901760
  %134 = vmatpush.msra.mxu0 %v133
  %v135 = vand.u32 %v21, 4294901760
  %v136 = vsub.f32 %v21, %v135
  %v137 = vand.u32 %v136, 4294901760
  %v138 = vsub.f32 %v136, %v137
  %v139 = vand.u32 %v138, 4294901760
  %140 = vmatpush.msra.mxu0 %v139
  %v141 = vand.u32 %v20, 4294901760
  %v142 = vsub.f32 %v20, %v141
  %v143 = vand.u32 %v142, 4294901760
  %v144 = vsub.f32 %v142, %v143
  %v145 = vand.u32 %v144, 4294901760
  %146 = vmatpush.msra.mxu0 %v145
  %v147 = vand.u32 %v19, 4294901760
  %v148 = vsub.f32 %v19, %v147
  %v149 = vand.u32 %v148, 4294901760
  %v150 = vsub.f32 %v148, %v149
  %v151 = vand.u32 %v150, 4294901760
  %152 = vmatpush.msra.mxu0 %v151
  %v153 = vand.u32 %v18, 4294901760
  %v154 = vsub.f32 %v18, %v153
  %v155 = vand.u32 %v154, 4294901760
  %v156 = vsub.f32 %v154, %v155
  %v157 = vand.u32 %v156, 4294901760
  %158 = vmatpush.msra.mxu0 %v157
  %v159 = vand.u32 %v17, 4294901760
  %v160 = vsub.f32 %v17, %v159
  %v161 = vand.u32 %v160, 4294901760
  %v162 = vsub.f32 %v160, %v161
  %v163 = vand.u32 %v162, 4294901760
  %164 = vmatpush.msra.mxu0 %v163
  %v165 = vand.u32 %v16, 4294901760
  %v166 = vsub.f32 %v16, %v165
  %v167 = vand.u32 %v166, 4294901760
  %v168 = vsub.f32 %v166, %v167
  %v169 = vand.u32 %v168, 4294901760
  %170 = vmatpush.msra.mxu0 %v169
  %v171 = vand.u32 %v15, 4294901760
  %172 = vmatmul.f32.gmra.mxu0 %v171
  %v173 = vpop.f32.mrf.mxu0
  %v174 = vadd.f32 %v73, %v173
  %175 = vdwg.mxu0
  %v176 = vand.u32 %v31, 4294901760
  %v177 = vsub.f32 %v31, %v176
  %178 = vmatpush.msra.mxu0 %v177
  %v179 = vand.u32 %v30, 4294901760
  %v180 = vsub.f32 %v30, %v179
  %181 = vmatpush.msra.mxu0 %v180
  %v182 = vand.u32 %v29, 4294901760
  %v183 = vsub.f32 %v29, %v182
  %184 = vmatpush.msra.mxu0 %v183
  %v185 = vand.u32 %v28, 4294901760
  %v186 = vsub.f32 %v28, %v185
  %187 = vmatpush.msra.mxu0 %v186
  %v188 = vand.u32 %v27, 4294901760
  %v189 = vsub.f32 %v27, %v188
  %190 = vmatpush.msra.mxu0 %v189
  %v191 = vand.u32 %v26, 4294901760
  %v192 = vsub.f32 %v26, %v191
  %193 = vmatpush.msra.mxu0 %v192
  %v194 = vand.u32 %v25, 4294901760
  %v195 = vsub.f32 %v25, %v194
  %196 = vmatpush.msra.mxu0 %v195
  %v197 = vand.u32 %v24, 4294901760
  %v198 = vsub.f32 %v24, %v197
  %199 = vmatpush.msra.mxu0 %v198
  %v200 = vand.u32 %v23, 4294901760
  %v201 = vsub.f32 %v23, %v200
  %202 = vmatpush.msra.mxu0 %v201
  %v203 = vand.u32 %v22, 4294901760
  %v204 = vsub.f32 %v22, %v203
  %205 = vmatpush.msra.mxu0 %v204
  %v206 = vand.u32 %v21, 4294901760
  %v207 = vsub.f32 %v21, %v206
  %208 = vmatpush.msra.mxu0 %v207
  %v209 = vand.u32 %v20, 4294901760
  %v210 = vsub.f32 %v20, %v209
  %211 = vmatpush.msra.mxu0 %v210
  %v212 = vand.u32 %v19, 4294901760
  %v213 = vsub.f32 %v19, %v212
  %214 = vmatpush.msra.mxu0 %v213
  %v215 = vand.u32 %v18, 4294901760
  %v216 = vsub.f32 %v18, %v215
  %217 = vmatpush.msra.mxu0 %v216
  %v218 = vand.u32 %v17, 4294901760
  %v219 = vsub.f32 %v17, %v218
  %220 = vmatpush.msra.mxu0 %v219
  %v221 = vand.u32 %v16, 4294901760
  %v222 = vsub.f32 %v16, %v221
  %223 = vmatpush.msra.mxu0 %v222
  %v224 = vand.u32 %v15, 4294901760
  %v225 = vsub.f32 %v15, %v224
  %226 = vmatmul.f32.gmra.mxu0 %v225
  %v227 = vpop.f32.mrf.mxu0
  %v228 = vadd.f32 %v174, %v227
  %229 = vdwg.mxu0
  %v230 = vand.u32 %v31, 4294901760
  %231 = vmatpush.msra.mxu0 %v230
  %v232 = vand.u32 %v30, 4294901760
  %233 = vmatpush.msra.mxu0 %v232
  %v234 = vand.u32 %v29, 4294901760
  %235 = vmatpush.msra.mxu0 %v234
  %v236 = vand.u32 %v28, 4294901760
  %237 = vmatpush.msra.mxu0 %v236
  %v238 = vand.u32 %v27, 4294901760
  %239 = vmatpush.msra.mxu0 %v238
  %v240 = vand.u32 %v26, 4294901760
  %241 = vmatpush.msra.mxu0 %v240
  %v242 = vand.u32 %v25, 4294901760
  %243 = vmatpush.msra.mxu0 %v242
  %v244 = vand.u32 %v24, 4294901760
  %245 = vmatpush.msra.mxu0 %v244
  %v246 = vand.u32 %v23, 4294901760
  %247 = vmatpush.msra.mxu0 %v246
  %v248 = vand.u32 %v22, 4294901760
  %249 = vmatpush.msra.mxu0 %v248
  %v250 = vand.u32 %v21, 4294901760
  %251 = vmatpush.msra.mxu0 %v250
  %v252 = vand.u32 %v20, 4294901760
  %253 = vmatpush.msra.mxu0 %v252
  %v254 = vand.u32 %v19, 4294901760
  %255 = vmatpush.msra.mxu0 %v254
  %v256 = vand.u32 %v18, 4294901760
  %257 = vmatpush.msra.mxu0 %v256
  %v258 = vand.u32 %v17, 4294901760
  %259 = vmatpush.msra.mxu0 %v258
  %v260 = vand.u32 %v16, 4294901760
  %261 = vmatpush.msra.mxu0 %v260
  %v262 = vand.u32 %v15, 4294901760
  %v263 = vsub.f32 %v15, %v262
  %v264 = vand.u32 %v263, 4294901760
  %265 = vmatmul.f32.gmra.mxu0 %v264
  %v266 = vpop.f32.mrf.mxu0
  %v267 = vadd.f32 %v228, %v266
  %268 = vdwg.mxu0
  %v269 = vand.u32 %v31, 4294901760
  %v270 = vsub.f32 %v31, %v269
  %v271 = vand.u32 %v270, 4294901760
  %272 = vmatpush.msra.mxu0 %v271
  %v273 = vand.u32 %v30, 4294901760
  %v274 = vsub.f32 %v30, %v273
  %v275 = vand.u32 %v274, 4294901760
  %276 = vmatpush.msra.mxu0 %v275
  %v277 = vand.u32 %v29, 4294901760
  %v278 = vsub.f32 %v29, %v277
  %v279 = vand.u32 %v278, 4294901760
  %280 = vmatpush.msra.mxu0 %v279
  %v281 = vand.u32 %v28, 4294901760
  %v282 = vsub.f32 %v28, %v281
  %v283 = vand.u32 %v282, 4294901760
  %284 = vmatpush.msra.mxu0 %v283
  %v285 = vand.u32 %v27, 4294901760
  %v286 = vsub.f32 %v27, %v285
  %v287 = vand.u32 %v286, 4294901760
  %288 = vmatpush.msra.mxu0 %v287
  %v289 = vand.u32 %v26, 4294901760
  %v290 = vsub.f32 %v26, %v289
  %v291 = vand.u32 %v290, 4294901760
  %292 = vmatpush.msra.mxu0 %v291
  %v293 = vand.u32 %v25, 4294901760
  %v294 = vsub.f32 %v25, %v293
  %v295 = vand.u32 %v294, 4294901760
  %296 = vmatpush.msra.mxu0 %v295
  %v297 = vand.u32 %v24, 4294901760
  %v298 = vsub.f32 %v24, %v297
  %v299 = vand.u32 %v298, 4294901760
  %300 = vmatpush.msra.mxu0 %v299
  %v301 = vand.u32 %v23, 4294901760
  %v302 = vsub.f32 %v23, %v301
  %v303 = vand.u32 %v302, 4294901760
  %304 = vmatpush.msra.mxu0 %v303
  %v305 = vand.u32 %v22, 4294901760
  %v306 = vsub.f32 %v22, %v305
  %v307 = vand.u32 %v306, 4294901760
  %308 = vmatpush.msra.mxu0 %v307
  %v309 = vand.u32 %v21, 4294901760
  %v310 = vsub.f32 %v21, %v309
  %v311 = vand.u32 %v310, 4294901760
  %312 = vmatpush.msra.mxu0 %v311
  %v313 = vand.u32 %v20, 4294901760
  %v314 = vsub.f32 %v20, %v313
  %v315 = vand.u32 %v314, 4294901760
  %316 = vmatpush.msra.mxu0 %v315
  %v317 = vand.u32 %v19, 4294901760
  %v318 = vsub.f32 %v19, %v317
  %v319 = vand.u32 %v318, 4294901760
  %320 = vmatpush.msra.mxu0 %v319
  %v321 = vand.u32 %v18, 4294901760
  %v322 = vsub.f32 %v18, %v321
  %v323 = vand.u32 %v322, 4294901760
  %324 = vmatpush.msra.mxu0 %v323
  %v325 = vand.u32 %v17, 4294901760
  %v326 = vsub.f32 %v17, %v325
  %v327 = vand.u32 %v326, 4294901760
  %328 = vmatpush.msra.mxu0 %v327
  %v329 = vand.u32 %v16, 4294901760
  %v330 = vsub.f32 %v16, %v329
  %v331 = vand.u32 %v330, 4294901760
  %332 = vmatpush.msra.mxu0 %v331
  %v333 = vand.u32 %v15, 4294901760
  %334 = vmatmul.f32.gmra.mxu0 %v333
  %v335 = vpop.f32.mrf.mxu0
  %v336 = vadd.f32 %v267, %v335
  %337 = vdwg.mxu0
  %v338 = vand.u32 %v31, 4294901760
  %339 = vmatpush.msra.mxu0 %v338
  %v340 = vand.u32 %v30, 4294901760
  %341 = vmatpush.msra.mxu0 %v340
  %v342 = vand.u32 %v29, 4294901760
  %343 = vmatpush.msra.mxu0 %v342
  %v344 = vand.u32 %v28, 4294901760
  %345 = vmatpush.msra.mxu0 %v344
  %v346 = vand.u32 %v27, 4294901760
  %347 = vmatpush.msra.mxu0 %v346
  %v348 = vand.u32 %v26, 4294901760
  %349 = vmatpush.msra.mxu0 %v348
  %v350 = vand.u32 %v25, 4294901760
  %351 = vmatpush.msra.mxu0 %v350
  %v352 = vand.u32 %v24, 4294901760
  %353 = vmatpush.msra.mxu0 %v352
  %v354 = vand.u32 %v23, 4294901760
  %355 = vmatpush.msra.mxu0 %v354
  %v356 = vand.u32 %v22, 4294901760
  %357 = vmatpush.msra.mxu0 %v356
  %v358 = vand.u32 %v21, 4294901760
  %359 = vmatpush.msra.mxu0 %v358
  %v360 = vand.u32 %v20, 4294901760
  %361 = vmatpush.msra.mxu0 %v360
  %v362 = vand.u32 %v19, 4294901760
  %363 = vmatpush.msra.mxu0 %v362
  %v364 = vand.u32 %v18, 4294901760
  %365 = vmatpush.msra.mxu0 %v364
  %v366 = vand.u32 %v17, 4294901760
  %367 = vmatpush.msra.mxu0 %v366
  %v368 = vand.u32 %v16, 4294901760
  %369 = vmatpush.msra.mxu0 %v368
  %v370 = vand.u32 %v15, 4294901760
  %371 = vmatmul.f32.gmra.mxu0 %v370
  %v372 = vpop.f32.mrf.mxu0
  %v373 = vadd.f32 %v336, %v372
  %374 = vdwg.mxu0
  %v375 = vxor.u32 %v373, 2147483648
  %v376 = vmul.f32 %v375, 1.442695
  %v377 = vpow.pop %v376
  %v378 = vadd.f32 %v377, 1.0
  %v379 = vrcp.pop %v378
  %v380 = vmul.f32 %v378, %v379
  %v381 = vsub.f32 1.0, %v380
  %v382 = vmul.f32 %v379, %v381
  %v383 = vadd.f32 %v379, %v382
  %vm384 = vweird.f32 %v378
  %vm385 = vweird.f32 %v379
  %vm386 = vmor %vm384, %vm385
  %v387 = vsel %vm386, %v379, %v383
  %v388 = vand.u32 2147483647, %v378
  %vm389 = vcmp.eq.f32.partialorder %v388, 8.507059e+37
  %v390 = vand.u32 %v378, 2147483648
  %v391 = vor.u32 1.1754944e-38, %v390
  %v392 = vsel %vm389, %v391, %v387
  %v393 = vmul.f32 1.0, %v392
  %vm394 = vcmask 25600
  %395 = vst.msk [vmem:[%s3] sm:$0x3] %vm394, %v393
  // Predicated region
  $region14: #{cost_sensitive_lr.1} parent=0 // pred_check
    _
  $region15: #{cost_sensitive_lr.1} parent=0 // pred_check_branch
    %397 = sbr.rel (0) target = $region17
  $region16: #{cost_sensitive_lr.1} parent=0 // pred_region
    _
  $region17: #{cost_sensitive_lr.1} parent=0 // pred_fallthru
    _
  // Predicated region
  $region18: #{cost_sensitive_lr.1} parent=0 // pred_check
    _
  $region19: #{cost_sensitive_lr.1} parent=0 // pred_check_branch
    %399 = sbr.rel (0) target = $region21
  $region20: #{cost_sensitive_lr.1} parent=0 // pred_region
    _
  $region21: #{cost_sensitive_lr.1} parent=0 // pred_fallthru
    _

</llo_original>
